<compile_context>
chip_gen: v7x
topology: tpu7x:2x2x1
jax: 0.10.0
libtpu: 0.0.40
codegen_flags: <defaults>
</compile_context>

<pallas_src>
import functools

import jax
import jax.numpy as jnp
from jax.experimental import pallas as pl
from jax.experimental.pallas import tpu as pltpu


def _vmem_budget_bytes():
    """Generation-aware scoped-VMEM budget (v7x: 64 MiB/TC, v5e/v6e: 128 MiB),
    leaving ~20 MiB headroom for compiler-internal scratch."""
    cap = 128 * 1024 * 1024
    try:
        cap = int(pltpu.get_tpu_info().vmem_capacity_bytes)
    except Exception:
        pass
    return max(min(cap - 20 * 1024 * 1024, 64 * 1024 * 1024), 16 * 1024 * 1024)


def _choose_row_tile(H, W, cin, cout, itemsize, vmem_budget, buffer_count=2):
    """Largest row tile TH that (a) divides H, (b) keeps the flat tile lane-aligned
    (TH*W % 128 == 0) unless it is the whole image, and (c) keeps the per-step resident
    VMEM (pipelined in/out blocks + halo slab + f32 accumulator) within ~60% of the
    scoped budget."""
    valid = [th for th in range(1, H + 1)
             if H % th == 0 and ((th * W) % 128 == 0 or th == H)]

    def resident_bytes(th):
        thw = th * W
        in_blk = cin * thw * itemsize
        out_blk = cout * thw * itemsize
        slab = cin * (((thw + 2 * W + 256) + 127) // 128) * 128 * itemsize
        acc = cout * thw * 4                     # f32 accumulator / epilogue temps
        return buffer_count * in_blk + 2 * out_blk + slab + acc

    cap = int(vmem_budget * 0.6)
    fitting = [th for th in valid if resident_bytes(th) <= cap]
    if fitting:
        return max(fitting)
    # TODO(synk): if even the smallest legal row tile exceeds the budget (huge W*Cin),
    # fall back to column (W) tiling or a Cin grid axis with accumulation.
    return min(valid)


def _seg_head_kernel(x_ref, halo_ref, w_ref, b_ref, o_ref, slab_ref, *,
                     W, TH, KH, KW, Cin, Cout, pad_lo):
    # x_ref   : (1, Cin, TH*W)         flat rows of this tile (no padding, no halo)
    # halo_ref: (1, 1, Cin, 2*W)       [row above tile | row below tile] (zeros at edges)
    # w_ref   : (KH*KW, Cout, Cin)     per-tap conv weights
    # b_ref   : (Cout, 1)              bias (f32)
    # o_ref   : (1, Cout, TH*W)        lane-dense NCHW output tile (flattened spatially)
    # slab_ref: (Cin, L) VMEM scratch  [uninit | top | tile | bot | uninit]
    THW = TH * W

    # Stage [top halo | tile | bot halo] into a contiguous slab so every conv tap is a
    # static lane-shifted view.  The head/tail pad lanes are intentionally left
    # uninitialized: the only taps that read them (kw==0 first lane, kw==KW-1 last lane)
    # are replaced by the keep_left / keep_right selects below (select, not multiply,
    # so garbage never propagates).
    halo = halo_ref[0, 0]                                                 # (Cin, 2W)
    slab_ref[:, pad_lo:pad_lo + W] = halo[:, :W]                          # row above
    slab_ref[:, pad_lo + W:pad_lo + W + THW] = x_ref[0]                   # tile rows
    slab_ref[:, pad_lo + W + THW:pad_lo + 2 * W + THW] = halo[:, W:]      # row below

    # Column-validity masks (the conv's left/right zero padding) — computed once.
    col = jax.lax.broadcasted_iota(jnp.int32, (1, THW), 1) % W
    keep_left = col != 0                          # taps reading column w-1
    keep_right = col != (W - 1)                   # taps reading column w+1

    # Nine accumulating MXU matmuls (no materialized im2col), f32 accumulation,
    # bias folded into the first tap's epilogue, lane-dense store.
    acc = None
    for kh in range(KH):
        for kw in range(KW):
            s = pad_lo + kh * W + (kw - (KW // 2))          # static lane offset
            piece = slab_ref[:, s:s + THW]                  # (Cin, TH*W)
            if kw == 0:
                piece = jnp.where(keep_left, piece, 0)
            elif kw == KW - 1:
                piece = jnp.where(keep_right, piece, 0)
            d = jnp.dot(w_ref[kh * KW + kw], piece,
                        preferred_element_type=jnp.float32)  # (Cout, TH*W)
            acc = d + b_ref[...] if acc is None else acc + d
    o_ref[0] = acc.astype(o_ref.dtype)


def segmentation_head_forward(x_nchw, weight, bias, *, kernel_size=3,
                              activation=None, upsampling=1, row_tile=None,
                              compute_dtype=None, buffer_count=2):
    """x_nchw: [B, Cin, H, W]; weight: [Cout, Cin, 3, 3] (PyTorch OIHW); bias: [Cout].

    Returns [B, Cout, H, W] (NCHW), matching nn.Conv2d(..., padding=1) followed by the
    module's default Identity upsampling / Identity activation.
    """
    assert upsampling == 1, "upsampling>1 not supported here"
    # TODO(synk): upsampling>1 (UpsamplingBilinear2d) not implemented; default 1 = Identity.
    assert activation is None, "non-identity activation not supported here"

    B, Cin, H, W = x_nchw.shape
    Cout, Cin_w, KH, KW = weight.shape
    assert Cin_w == Cin and KH == KW == kernel_size == 3
    # TODO(synk): only kernel_size=3 (the module default); other odd sizes need K//2 halo rows.

    if compute_dtype is not None:                 # e.g. bf16 I/O; accumulation stays f32
        x_nchw = x_nchw.astype(compute_dtype)
        weight = weight.astype(compute_dtype)
    dtype = x_nchw.dtype

    vmem_budget = _vmem_budget_bytes()
    if row_tile is None:
        TH = _choose_row_tile(H, W, Cin, Cout, jnp.dtype(dtype).itemsize,
                              vmem_budget, buffer_count)
    else:
        TH = row_tile
    assert H % TH == 0 and (TH == H or (TH * W) % 128 == 0)
    nT = H // TH
    THW, HW = TH * W, H * W

    # Free reshapes / tiny side tensors only — no full-tensor transpose or pad of x.
    x_flat = x_nchw.reshape(B, Cin, HW)
    w_taps = jnp.transpose(weight, (2, 3, 0, 1)).reshape(KH * KW, Cout, Cin)
    b2d = bias.astype(jnp.float32).reshape(Cout, 1)

    # One merged halo tensor (B, nT, Cin, 2*W): [row above tile | row below tile],
    # zeros at the image top/bottom -> a single small DMA per grid step.
    zero_row = jnp.zeros((B, Cin, 1, W), dtype)
    if nT > 1:
        top_rows = jnp.concatenate([zero_row, x_nchw[:, :, TH - 1:H - 1:TH, :]], axis=2)
        bot_rows = jnp.concatenate([x_nchw[:, :, TH:H:TH, :], zero_row], axis=2)
    else:
        top_rows, bot_rows = zero_row, zero_row
    halo = jnp.concatenate([jnp.transpose(top_rows, (0, 2, 1, 3)),
                            jnp.transpose(bot_rows, (0, 2, 1, 3))], axis=3)  # (B,nT,Cin,2W)

    pad_lo = ((-W) % 128) or 128                  # align the main tile copy to lane 0
    L = ((pad_lo + (TH + 2) * W + 1 + 127) // 128) * 128

    kernel = functools.partial(_seg_head_kernel, W=W, TH=TH, KH=KH, KW=KW,
                               Cin=Cin, Cout=Cout, pad_lo=pad_lo)

    x_spec_kwargs = {}
    if buffer_count != 2:                         # e.g. pl.Buffered(3) on v7x
        x_spec_kwargs["pipeline_mode"] = pl.Buffered(buffer_count)

    out_flat = pl.pallas_call(
        kernel,
        out_shape=jax.ShapeDtypeStruct((B, Cout, HW), dtype),
        grid_spec=pltpu.PrefetchScalarGridSpec(
            num_scalar_prefetch=0,
            grid=(B, nT),
            in_specs=[
                pl.BlockSpec((1, Cin, THW), lambda b, t: (b, 0, t), **x_spec_kwargs),
                pl.BlockSpec((1, 1, Cin, 2 * W), lambda b, t: (b, t, 0, 0)),
                pl.BlockSpec((KH * KW, Cout, Cin), lambda b, t: (0, 0, 0)),
                pl.BlockSpec((Cout, 1), lambda b, t: (0, 0)),
            ],
            out_specs=pl.BlockSpec((1, Cout, THW), lambda b, t: (b, 0, t)),
            scratch_shapes=[pltpu.VMEM((Cin, L), dtype)],
        ),
        compiler_params=pltpu.CompilerParams(
            dimension_semantics=("parallel", "parallel"),
            vmem_limit_bytes=vmem_budget),
    )(x_flat, halo, w_taps, b2d)

    return out_flat.reshape(B, Cout, H, W)        # free reshape, already NCHW


if __name__ == "__main__":
    key = jax.random.PRNGKey(0)
    k_x, k_w, k_b = jax.random.split(key, 3)

    B, Cin, H, W = 2, 4, 16, 16
    Cout, K = 3, 3

    x = jax.random.normal(k_x, (B, Cin, H, W), dtype=jnp.float32)
    weight = jax.random.normal(k_w, (Cout, Cin, K, K), dtype=jnp.float32) * 0.1
    bias = jax.random.normal(k_b, (Cout,), dtype=jnp.float32) * 0.1

    # Pure-JAX reference (same-padding conv, NCHW).
    ref = jax.lax.conv_general_dilated(
        x, weight, window_strides=(1, 1), padding="SAME",
        dimension_numbers=("NCHW", "OIHW", "NCHW")) + bias[None, :, None, None]

    # Tiled path (nT=2: exercises halo rows, column masks, uninitialized pad lanes).
    out_tiled = segmentation_head_forward(x, weight, bias, kernel_size=K,
                                          activation=None, upsampling=1, row_tile=8)
    out_tiled = jax.block_until_ready(out_tiled)
    assert out_tiled.shape == (B, Cout, H, W)
    assert jnp.allclose(out_tiled, ref, atol=1e-4, rtol=1e-4)

    # Auto-tile path (single tile per image at this size).
    out_auto = segmentation_head_forward(x, weight, bias, kernel_size=K,
                                         activation=None, upsampling=1)
    out_auto = jax.block_until_ready(out_auto)
    assert jnp.allclose(out_auto, ref, atol=1e-4, rtol=1e-4)

    # bf16 I/O path (halves HBM traffic; f32 accumulation retained).
    out_bf16 = segmentation_head_forward(x, weight, bias, kernel_size=K,
                                         activation=None, upsampling=1, row_tile=8,
                                         compute_dtype=jnp.bfloat16)
    out_bf16 = jax.block_until_ready(out_bf16)
    assert jnp.allclose(out_bf16.astype(jnp.float32), ref, atol=1e-1, rtol=5e-2)

    print("KERNEL_OK")
</pallas_src>

<mosaic_0001>
module attributes {stable_mosaic.version = 11 : i64} {
  func.func @_seg_head_kernel(%arg0: i32, %arg1: i32, %arg2: memref<1x4x128xf32, #tpu.memory_space<vmem>>, %arg3: memref<1x1x4x32xf32, #tpu.memory_space<vmem>>, %arg4: memref<9x3x4xf32, #tpu.memory_space<vmem>>, %arg5: memref<3x1xf32, #tpu.memory_space<vmem>>, %arg6: memref<1x3x128xf32, #tpu.memory_space<vmem>>, %arg7: memref<4x384xf32, #tpu.memory_space<vmem>>) attributes {dimension_semantics = [#tpu.dimension_semantics<parallel>, #tpu.dimension_semantics<parallel>], iteration_bounds = array<i64: 2, 2>, scalar_prefetch = 0 : i64, scratch_operands = 1 : i64, tpu.core_type = #tpu.core_type<tc>, window_params = [{transform_indices = @transform_0, window_bounds = array<i64: 1, 4, 128>}, {transform_indices = @transform_1, window_bounds = array<i64: 1, 1, 4, 32>}, {pipeline_mode = #tpu.pipeline_mode<synchronous>, transform_indices = @transform_2, window_bounds = array<i64: 9, 3, 4>}, {pipeline_mode = #tpu.pipeline_mode<synchronous>, transform_indices = @transform_3, window_bounds = array<i64: 3, 1>}, {transform_indices = @transform_4, window_bounds = array<i64: 1, 3, 128>}]} {
    %c0 = arith.constant 0 : index
    %c0_0 = arith.constant 0 : index
    %c0_1 = arith.constant 0 : index
    %c0_2 = arith.constant 0 : index
    %0 = vector.load %arg3[%c0, %c0_0, %c0_1, %c0_2] : memref<1x1x4x32xf32, #tpu.memory_space<vmem>>, vector<1x1x4x32xf32>
    %1 = vector.shape_cast %0 : vector<1x1x4x32xf32> to vector<4x32xf32>
    %2 = vector.extract_strided_slice %1 {offsets = [0, 0], sizes = [4, 16], strides = [1, 1]} : vector<4x32xf32> to vector<4x16xf32>
    %c0_3 = arith.constant 0 : index
    %c112 = arith.constant 112 : index
    %3 = vector.load %arg7[%c0_3, %c112] : memref<4x384xf32, #tpu.memory_space<vmem>>, vector<4x16xf32>
    tpu.vector_store %arg7[%c0_3, %c112], %2 {strides = array<i32>} : memref<4x384xf32, #tpu.memory_space<vmem>>, vector<4x16xf32>,
    %c0_4 = arith.constant 0 : index
    %c0_5 = arith.constant 0 : index
    %c0_6 = arith.constant 0 : index
    %4 = vector.load %arg2[%c0_4, %c0_5, %c0_6] : memref<1x4x128xf32, #tpu.memory_space<vmem>>, vector<1x4x128xf32>
    %5 = vector.shape_cast %4 : vector<1x4x128xf32> to vector<4x128xf32>
    %c0_7 = arith.constant 0 : index
    %c128 = arith.constant 128 : index
    %6 = vector.load %arg7[%c0_7, %c128] : memref<4x384xf32, #tpu.memory_space<vmem>>, vector<4x128xf32>
    tpu.vector_store %arg7[%c0_7, %c128], %5 {strides = array<i32>} : memref<4x384xf32, #tpu.memory_space<vmem>>, vector<4x128xf32>,
    %7 = vector.extract_strided_slice %1 {offsets = [0, 16], sizes = [4, 16], strides = [1, 1]} : vector<4x32xf32> to vector<4x16xf32>
    %c0_8 = arith.constant 0 : index
    %c256 = arith.constant 256 : index
    %8 = vector.load %arg7[%c0_8, %c256] : memref<4x384xf32, #tpu.memory_space<vmem>>, vector<4x16xf32>
    tpu.vector_store %arg7[%c0_8, %c256], %7 {strides = array<i32>} : memref<4x384xf32, #tpu.memory_space<vmem>>, vector<4x16xf32>,
    %9 = tpu.iota {dimensions = array<i32: 1>} : vector<1x128xi32>
    %c16_i32 = arith.constant 16 : i32
    %c0_i32 = arith.constant 0 : i32
    %10 = arith.cmpi eq, %c16_i32, %c0_i32 : i32
    %c1_i32 = arith.constant 1 : i32
    %11 = arith.select %10, %c1_i32, %c16_i32 : i32
    %12 = vector.broadcast %11 : i32 to vector<1x128xi32>
    %13 = arith.remsi %9, %12 : vector<1x128xi32>
    %c0_i32_9 = arith.constant 0 : i32
    %14 = vector.broadcast %c0_i32_9 : i32 to vector<1x128xi32>
    %15 = arith.cmpi ne, %13, %14 : vector<1x128xi32>
    %c0_i32_10 = arith.constant 0 : i32
    %16 = vector.broadcast %c0_i32_10 : i32 to vector<1x128xi32>
    %17 = arith.cmpi slt, %13, %16 : vector<1x128xi32>
    %c0_i32_11 = arith.constant 0 : i32
    %18 = arith.cmpi slt, %11, %c0_i32_11 : i32
    %19 = vector.broadcast %18 : i1 to vector<1x128xi1>
    %20 = vector.broadcast %19 : vector<1x128xi1> to vector<1x128xi1>
    %21 = arith.xori %17, %20 : vector<1x128xi1>
    %22 = arith.andi %21, %15 : vector<1x128xi1>
    %23 = vector.broadcast %11 : i32 to vector<1x128xi32>
    %24 = arith.addi %13, %23 : vector<1x128xi32>
    %25 = arith.select %22, %24, %13 : vector<1x128xi1>, vector<1x128xi32>
    %c0_i32_12 = arith.constant 0 : i32
    %26 = vector.broadcast %c0_i32_12 : i32 to vector<1x128xi32>
    %27 = arith.cmpi ne, %25, %26 : vector<1x128xi32>
    %c15_i32 = arith.constant 15 : i32
    %28 = vector.broadcast %c15_i32 : i32 to vector<1x128xi32>
    %29 = arith.cmpi ne, %25, %28 : vector<1x128xi32>
    %c0_13 = arith.constant 0 : index
    %c111 = arith.constant 111 : index
    %30 = vector.load %arg7[%c0_13, %c111] : memref<4x384xf32, #tpu.memory_space<vmem>>, vector<4x128xf32>
    %c0_i32_14 = arith.constant 0 : i32
    %31 = arith.sitofp %c0_i32_14 : i32 to f32
    %32 = vector.shape_cast %27 : vector<1x128xi1> to vector<1x128xi1>
    %33 = vector.broadcast %32 : vector<1x128xi1> to vector<4x128xi1>
    %34 = vector.broadcast %31 : f32 to vector<4x128xf32>
    %35 = arith.select %33, %30, %34 : vector<4x128xi1>, vector<4x128xf32>
    %c0_15 = arith.constant 0 : index
    %c0_16 = arith.constant 0 : index
    %c0_17 = arith.constant 0 : index
    %36 = vector.load %arg4[%c0_15, %c0_16, %c0_17] : memref<9x3x4xf32, #tpu.memory_space<vmem>>, vector<1x3x4xf32>
    %37 = vector.shape_cast %36 : vector<1x3x4xf32> to vector<3x4xf32>
    %cst = arith.constant dense<0.000000e+00> : vector<3x128xf32>
    %38 = tpu.matmul %37, %35, %cst {dimension_numbers = #tpu.dot_dimension_numbers<[1], [0], [0], [1], [0, 0, 1, 1], [], []>} : vector<3x4xf32>, vector<4x128xf32>, vector<3x128xf32> -> vector<3x128xf32>
    %c0_18 = arith.constant 0 : index
    %c0_19 = arith.constant 0 : index
    %39 = vector.load %arg5[%c0_18, %c0_19] : memref<3x1xf32, #tpu.memory_space<vmem>>, vector<3x1xf32>
    %40 = vector.broadcast %39 : vector<3x1xf32> to vector<3x128xf32>
    %41 = arith.addf %38, %40 : vector<3x128xf32>
    %c0_20 = arith.constant 0 : index
    %c112_21 = arith.constant 112 : index
    %42 = vector.load %arg7[%c0_20, %c112_21] : memref<4x384xf32, #tpu.memory_space<vmem>>, vector<4x128xf32>
    %c1 = arith.constant 1 : index
    %c0_22 = arith.constant 0 : index
    %c0_23 = arith.constant 0 : index
    %43 = vector.load %arg4[%c1, %c0_22, %c0_23] : memref<9x3x4xf32, #tpu.memory_space<vmem>>, vector<1x3x4xf32>
    %44 = vector.shape_cast %43 : vector<1x3x4xf32> to vector<3x4xf32>
    %cst_24 = arith.constant dense<0.000000e+00> : vector<3x128xf32>
    %45 = tpu.matmul %44, %42, %cst_24 {dimension_numbers = #tpu.dot_dimension_numbers<[1], [0], [0], [1], [0, 0, 1, 1], [], []>} : vector<3x4xf32>, vector<4x128xf32>, vector<3x128xf32> -> vector<3x128xf32>
    %46 = arith.addf %41, %45 : vector<3x128xf32>
    %c0_25 = arith.constant 0 : index
    %c113 = arith.constant 113 : index
    %47 = vector.load %arg7[%c0_25, %c113] : memref<4x384xf32, #tpu.memory_space<vmem>>, vector<4x128xf32>
    %c0_i32_26 = arith.constant 0 : i32
    %48 = arith.sitofp %c0_i32_26 : i32 to f32
    %49 = vector.shape_cast %29 : vector<1x128xi1> to vector<1x128xi1>
    %50 = vector.broadcast %49 : vector<1x128xi1> to vector<4x128xi1>
    %51 = vector.broadcast %48 : f32 to vector<4x128xf32>
    %52 = arith.select %50, %47, %51 : vector<4x128xi1>, vector<4x128xf32>
    %c2 = arith.constant 2 : index
    %c0_27 = arith.constant 0 : index
    %c0_28 = arith.constant 0 : index
    %53 = vector.load %arg4[%c2, %c0_27, %c0_28] : memref<9x3x4xf32, #tpu.memory_space<vmem>>, vector<1x3x4xf32>
    %54 = vector.shape_cast %53 : vector<1x3x4xf32> to vector<3x4xf32>
    %cst_29 = arith.constant dense<0.000000e+00> : vector<3x128xf32>
    %55 = tpu.matmul %54, %52, %cst_29 {dimension_numbers = #tpu.dot_dimension_numbers<[1], [0], [0], [1], [0, 0, 1, 1], [], []>} : vector<3x4xf32>, vector<4x128xf32>, vector<3x128xf32> -> vector<3x128xf32>
    %56 = arith.addf %46, %55 : vector<3x128xf32>
    %c0_30 = arith.constant 0 : index
    %c127 = arith.constant 127 : index
    %57 = vector.load %arg7[%c0_30, %c127] : memref<4x384xf32, #tpu.memory_space<vmem>>, vector<4x128xf32>
    %c0_i32_31 = arith.constant 0 : i32
    %58 = arith.sitofp %c0_i32_31 : i32 to f32
    %59 = vector.shape_cast %27 : vector<1x128xi1> to vector<1x128xi1>
    %60 = vector.broadcast %59 : vector<1x128xi1> to vector<4x128xi1>
    %61 = vector.broadcast %58 : f32 to vector<4x128xf32>
    %62 = arith.select %60, %57, %61 : vector<4x128xi1>, vector<4x128xf32>
    %c3 = arith.constant 3 : index
    %c0_32 = arith.constant 0 : index
    %c0_33 = arith.constant 0 : index
    %63 = vector.load %arg4[%c3, %c0_32, %c0_33] : memref<9x3x4xf32, #tpu.memory_space<vmem>>, vector<1x3x4xf32>
    %64 = vector.shape_cast %63 : vector<1x3x4xf32> to vector<3x4xf32>
    %cst_34 = arith.constant dense<0.000000e+00> : vector<3x128xf32>
    %65 = tpu.matmul %64, %62, %cst_34 {dimension_numbers = #tpu.dot_dimension_numbers<[1], [0], [0], [1], [0, 0, 1, 1], [], []>} : vector<3x4xf32>, vector<4x128xf32>, vector<3x128xf32> -> vector<3x128xf32>
    %66 = arith.addf %56, %65 : vector<3x128xf32>
    %c0_35 = arith.constant 0 : index
    %c128_36 = arith.constant 128 : index
    %67 = vector.load %arg7[%c0_35, %c128_36] : memref<4x384xf32, #tpu.memory_space<vmem>>, vector<4x128xf32>
    %c4 = arith.constant 4 : index
    %c0_37 = arith.constant 0 : index
    %c0_38 = arith.constant 0 : index
    %68 = vector.load %arg4[%c4, %c0_37, %c0_38] : memref<9x3x4xf32, #tpu.memory_space<vmem>>, vector<1x3x4xf32>
    %69 = vector.shape_cast %68 : vector<1x3x4xf32> to vector<3x4xf32>
    %cst_39 = arith.constant dense<0.000000e+00> : vector<3x128xf32>
    %70 = tpu.matmul %69, %67, %cst_39 {dimension_numbers = #tpu.dot_dimension_numbers<[1], [0], [0], [1], [0, 0, 1, 1], [], []>} : vector<3x4xf32>, vector<4x128xf32>, vector<3x128xf32> -> vector<3x128xf32>
    %71 = arith.addf %66, %70 : vector<3x128xf32>
    %c0_40 = arith.constant 0 : index
    %c129 = arith.constant 129 : index
    %72 = vector.load %arg7[%c0_40, %c129] : memref<4x384xf32, #tpu.memory_space<vmem>>, vector<4x128xf32>
    %c0_i32_41 = arith.constant 0 : i32
    %73 = arith.sitofp %c0_i32_41 : i32 to f32
    %74 = vector.shape_cast %29 : vector<1x128xi1> to vector<1x128xi1>
    %75 = vector.broadcast %74 : vector<1x128xi1> to vector<4x128xi1>
    %76 = vector.broadcast %73 : f32 to vector<4x128xf32>
    %77 = arith.select %75, %72, %76 : vector<4x128xi1>, vector<4x128xf32>
    %c5 = arith.constant 5 : index
    %c0_42 = arith.constant 0 : index
    %c0_43 = arith.constant 0 : index
    %78 = vector.load %arg4[%c5, %c0_42, %c0_43] : memref<9x3x4xf32, #tpu.memory_space<vmem>>, vector<1x3x4xf32>
    %79 = vector.shape_cast %78 : vector<1x3x4xf32> to vector<3x4xf32>
    %cst_44 = arith.constant dense<0.000000e+00> : vector<3x128xf32>
    %80 = tpu.matmul %79, %77, %cst_44 {dimension_numbers = #tpu.dot_dimension_numbers<[1], [0], [0], [1], [0, 0, 1, 1], [], []>} : vector<3x4xf32>, vector<4x128xf32>, vector<3x128xf32> -> vector<3x128xf32>
    %81 = arith.addf %71, %80 : vector<3x128xf32>
    %c0_45 = arith.constant 0 : index
    %c143 = arith.constant 143 : index
    %82 = vector.load %arg7[%c0_45, %c143] : memref<4x384xf32, #tpu.memory_space<vmem>>, vector<4x128xf32>
    %c0_i32_46 = arith.constant 0 : i32
    %83 = arith.sitofp %c0_i32_46 : i32 to f32
    %84 = vector.shape_cast %27 : vector<1x128xi1> to vector<1x128xi1>
    %85 = vector.broadcast %84 : vector<1x128xi1> to vector<4x128xi1>
    %86 = vector.broadcast %83 : f32 to vector<4x128xf32>
    %87 = arith.select %85, %82, %86 : vector<4x128xi1>, vector<4x128xf32>
    %c6 = arith.constant 6 : index
    %c0_47 = arith.constant 0 : index
    %c0_48 = arith.constant 0 : index
    %88 = vector.load %arg4[%c6, %c0_47, %c0_48] : memref<9x3x4xf32, #tpu.memory_space<vmem>>, vector<1x3x4xf32>
    %89 = vector.shape_cast %88 : vector<1x3x4xf32> to vector<3x4xf32>
    %cst_49 = arith.constant dense<0.000000e+00> : vector<3x128xf32>
    %90 = tpu.matmul %89, %87, %cst_49 {dimension_numbers = #tpu.dot_dimension_numbers<[1], [0], [0], [1], [0, 0, 1, 1], [], []>} : vector<3x4xf32>, vector<4x128xf32>, vector<3x128xf32> -> vector<3x128xf32>
    %91 = arith.addf %81, %90 : vector<3x128xf32>
    %c0_50 = arith.constant 0 : index
    %c144 = arith.constant 144 : index
    %92 = vector.load %arg7[%c0_50, %c144] : memref<4x384xf32, #tpu.memory_space<vmem>>, vector<4x128xf32>
    %c7 = arith.constant 7 : index
    %c0_51 = arith.constant 0 : index
    %c0_52 = arith.constant 0 : index
    %93 = vector.load %arg4[%c7, %c0_51, %c0_52] : memref<9x3x4xf32, #tpu.memory_space<vmem>>, vector<1x3x4xf32>
    %94 = vector.shape_cast %93 : vector<1x3x4xf32> to vector<3x4xf32>
    %cst_53 = arith.constant dense<0.000000e+00> : vector<3x128xf32>
    %95 = tpu.matmul %94, %92, %cst_53 {dimension_numbers = #tpu.dot_dimension_numbers<[1], [0], [0], [1], [0, 0, 1, 1], [], []>} : vector<3x4xf32>, vector<4x128xf32>, vector<3x128xf32> -> vector<3x128xf32>
    %96 = arith.addf %91, %95 : vector<3x128xf32>
    %c0_54 = arith.constant 0 : index
    %c145 = arith.constant 145 : index
    %97 = vector.load %arg7[%c0_54, %c145] : memref<4x384xf32, #tpu.memory_space<vmem>>, vector<4x128xf32>
    %c0_i32_55 = arith.constant 0 : i32
    %98 = arith.sitofp %c0_i32_55 : i32 to f32
    %99 = vector.shape_cast %29 : vector<1x128xi1> to vector<1x128xi1>
    %100 = vector.broadcast %99 : vector<1x128xi1> to vector<4x128xi1>
    %101 = vector.broadcast %98 : f32 to vector<4x128xf32>
    %102 = arith.select %100, %97, %101 : vector<4x128xi1>, vector<4x128xf32>
    %c8 = arith.constant 8 : index
    %c0_56 = arith.constant 0 : index
    %c0_57 = arith.constant 0 : index
    %103 = vector.load %arg4[%c8, %c0_56, %c0_57] : memref<9x3x4xf32, #tpu.memory_space<vmem>>, vector<1x3x4xf32>
    %104 = vector.shape_cast %103 : vector<1x3x4xf32> to vector<3x4xf32>
    %cst_58 = arith.constant dense<0.000000e+00> : vector<3x128xf32>
    %105 = tpu.matmul %104, %102, %cst_58 {dimension_numbers = #tpu.dot_dimension_numbers<[1], [0], [0], [1], [0, 0, 1, 1], [], []>} : vector<3x4xf32>, vector<4x128xf32>, vector<3x128xf32> -> vector<3x128xf32>
    %106 = arith.addf %96, %105 : vector<3x128xf32>
    %c0_59 = arith.constant 0 : index
    %c0_60 = arith.constant 0 : index
    %c0_61 = arith.constant 0 : index
    %107 = vector.load %arg6[%c0_59, %c0_60, %c0_61] : memref<1x3x128xf32, #tpu.memory_space<vmem>>, vector<1x3x128xf32>
    %108 = vector.shape_cast %107 : vector<1x3x128xf32> to vector<3x128xf32>
    %109 = vector.shape_cast %106 : vector<3x128xf32> to vector<1x3x128xf32>
    tpu.vector_store %arg6[%c0_59, %c0_60, %c0_61], %109 {strides = array<i32>} : memref<1x3x128xf32, #tpu.memory_space<vmem>>, vector<1x3x128xf32>,
    return
  }
  func.func @transform_0(%arg0: i32, %arg1: i32) -> (i32, i32, i32) {
    %c0_i32 = arith.constant 0 : i32
    %c0_i32_0 = arith.constant 0 : i32
    return %arg0, %c0_i32, %arg1 : i32, i32, i32
  }
  func.func @transform_1(%arg0: i32, %arg1: i32) -> (i32, i32, i32, i32) {
    %c0_i32 = arith.constant 0 : i32
    %c0_i32_0 = arith.constant 0 : i32
    %c0_i32_1 = arith.constant 0 : i32
    return %arg0, %arg1, %c0_i32, %c0_i32_0 : i32, i32, i32, i32
  }
  func.func @transform_2(%arg0: i32, %arg1: i32) -> (i32, i32, i32) {
    %c0_i32 = arith.constant 0 : i32
    %c0_i32_0 = arith.constant 0 : i32
    %c0_i32_1 = arith.constant 0 : i32
    %c0_i32_2 = arith.constant 0 : i32
    return %c0_i32, %c0_i32_0, %c0_i32_1 : i32, i32, i32
  }
  func.func @transform_3(%arg0: i32, %arg1: i32) -> (i32, i32) {
    %c0_i32 = arith.constant 0 : i32
    %c0_i32_0 = arith.constant 0 : i32
    %c0_i32_1 = arith.constant 0 : i32
    return %c0_i32, %c0_i32_0 : i32, i32
  }
  func.func @transform_4(%arg0: i32, %arg1: i32) -> (i32, i32, i32) {
    %c0_i32 = arith.constant 0 : i32
    %c0_i32_0 = arith.constant 0 : i32
    return %arg0, %c0_i32, %arg1 : i32, i32, i32
  }
}

</mosaic_0001>

<llo_original>
// kernel: tpu_custom_call.1
$region0: #{tpu_custom_call.1}
  #allocation0 [shape = 'u32[]', space=smem, size = 0x4, offset = 0x4, fixed_abs, tag = 'smem constant byte address 0x4 - core index']
  #allocation1 [shape = 'u32[144,128]{1,0:T(1,128)}', space=vmem, size = 0x12000, scoped, tag = 'internal scratch']
  #allocation2 [shape = 'f32[4,384]{1,0:T(4,128)}', space=vmem, size = 0x1800, scoped, tag = 'scratch operand']
  %s0 = inlined_call_operand.hbm [shape: f32[2,4,256], index: 0, kind: input, shape index: {}]
  %s1 = inlined_call_operand.hbm [shape: f32[2,2,4,32], index: 1, kind: input, shape index: {}]
  %s2 = inlined_call_operand.hbm [shape: f32[9,3,4], index: 2, kind: input, shape index: {}]
  %s3 = inlined_call_operand.hbm [shape: f32[3,1], index: 3, kind: input, shape index: {}]
  %s4 = inlined_call_operand.hbm [shape: f32[2,3,256], index: 4, kind: output, shape index: {}]
  %s5 = sld [smem:[#allocation0]]
  $region65: #{tpu_custom_call.1} parent=0
    _
  %s7 = ssub.s32 1, %s5
  %s8 = scalar_select 0, %s7, %s5
  $region1: #{tpu_custom_call.1} parent=0
    #allocation3 [shape = 'u8[4096]{0}', space=vmem, size = 0x1000, scoped, tag = 'input window, operand 0']
    #allocation4 [shape = 's32[2]{0}', space=sflag, size = 0x8, scoped, tag = 'scoped memory for tpu_custom_call.1']
    #allocation5 [shape = 's32[2]{0}', space=sflag, size = 0x8, scoped, tag = 'scoped memory for tpu_custom_call.1']
    #allocation6 [shape = 'u8[4096]{0}', space=vmem, size = 0x1000, scoped, tag = 'input window, operand 1']
    #allocation7 [shape = 's32[2]{0}', space=sflag, size = 0x8, scoped, tag = 'scoped memory for tpu_custom_call.1']
    #allocation8 [shape = 'u8[18432]{0}', space=vmem, size = 0x4800, scoped, tag = 'input window, operand 2, single buffered']
    #allocation9 [shape = 'u8[2048]{0}', space=vmem, size = 0x800, scoped, tag = 'input window, operand 3, single buffered']
    #allocation10 [shape = 's32[1]{0}', space=sflag, size = 0x4, scoped, tag = 'scoped memory for tpu_custom_call.1']
    #allocation11 [shape = 'u8[4096]{0}', space=vmem, size = 0x1000, scoped, tag = 'output window, operand 0']
    %9 = vsyncpa [#allocation4], 0
    %s10 = scalar_lea.sflag [#allocation4], 1
    %11 = vsyncpa %s10, 0
    %12 = vsyncpa [#allocation7], 0
    %s13 = scalar_lea.sflag [#allocation7], 1
    %14 = vsyncpa %s13, 0
    %15 = vsyncpa [#allocation10], 0
    %16 = vsyncpa [#allocation5], 0
    %s17 = scalar_lea.sflag [#allocation5], 1
    %18 = vsyncpa %s17, 0
    loop: start=0, step=1, limit=6
    $region2: #{tpu_custom_call.1} parent=1 // loop_pre_header
      _
    $region3: #{tpu_custom_call.1} parent=1 // loop_header
      %s20 = sphi 0, %s24
      %p21 = scmp.ge.s32.totalorder %s20, 6
      %s27 = sphi 0, %s39
      %s28 = sphi 0, %s35
      %s29 = sphi 0, %s27
      %s30 = sphi 0, %s28
      %s31 = sphi 0, %s29
      %s32 = sphi 0, %s30
      %s44 = sphi 0, %s46
      %s47 = sphi 0, %s44
      %s48 = sphi 0, %s47
      %s64 = sphi 0, %s48
      %s72 = sphi 0, %s74
      %s75 = sphi 0, %s72
      %s76 = sphi 0, %s75
      %s92 = sphi 0, %s76
      %s96 = sphi 0, %s96
      %s98 = sphi 0, %s96
      %s99 = sphi 0, %s98
      %s113 = sphi 0, %s99
      %s117 = sphi 0, %s117
      %s119 = sphi 0, %s117
      %s120 = sphi 0, %s119
      %s134 = sphi 0, %s120
      %s142 = sphi 0, %s144
      %s145 = sphi 0, %s142
      %s146 = sphi 0, %s145
      %s162 = sphi 0, %s146
    $region4: #{tpu_custom_call.1} parent=1 // loop_header_branch
      %23 = sbr.rel (%p21) target = $region8
    $region5: #{tpu_custom_call.1} parent=1 // loop_body
      %s25 = ssub.s32 %s20, 1
      %s26 = ssub.s32 %s20, 2
      %s33 = sadd.s32 1, %s28
      %p34 = scmp.ge.s32.totalorder %s33, 2
      %s35 = scalar_select %p34, 0, %s33
      %s36 = sadd.s32 1, %s27
      %s37 = scalar_select %p34, %s36, %s27
      %p38 = scmp.ge.s32.totalorder %s37, 2
      %s39 = scalar_select %p38, 0, %s37
      %s40 = ssub.s32 %s27, %s39
      %s41 = ssub.s32 %s28, %s35
      %s42 = sor.u32 %s40, %s41
      %p43 = scmp.eq.s32.totalorder %s42, 0
      %s45 = sadd.s32 %s44, 1
      %s46 = scalar_select %p43, %s44, %s45
      %p49 = pneg %p43
      %p50 = scmp.eq.s32.totalorder %s20, 3
      %p51 = por %p49, %p50
      %p52 = scmp.ne.s32.totalorder %s44, %s47
      %p53 = scmp.eq.s32.totalorder %s20, 0
      %p54 = por %p52, %p53
      %p55 = scmp.ne.s32.totalorder %s44, %s47
      %p56 = scmp.eq.s32.totalorder %s25, 3
      %p57 = por %p55, %p56
      %p58 = scmp.ne.s32.totalorder %s47, %s48
      %p59 = scmp.eq.s32.totalorder %s25, 0
      %p60 = por %p58, %p59
      %p61 = scmp.ne.s32.totalorder %s47, %s48
      %p62 = scmp.eq.s32.totalorder %s26, 3
      %p63 = por %p61, %p62
      %p65 = scmp.ne.s32.totalorder %s48, %s64
      %p66 = scmp.eq.s32.totalorder %s26, 0
      %p67 = por %p65, %p66
      %s68 = ssub.s32 %s27, %s39
      %s69 = ssub.s32 %s28, %s35
      %s70 = sor.u32 %s68, %s69
      %p71 = scmp.eq.s32.totalorder %s70, 0
      %s73 = sadd.s32 %s72, 1
      %s74 = scalar_select %p71, %s72, %s73
      %p77 = pneg %p71
      %p78 = scmp.eq.s32.totalorder %s20, 3
      %p79 = por %p77, %p78
      %p80 = scmp.ne.s32.totalorder %s72, %s75
      %p81 = scmp.eq.s32.totalorder %s20, 0
      %p82 = por %p80, %p81
      %p83 = scmp.ne.s32.totalorder %s72, %s75
      %p84 = scmp.eq.s32.totalorder %s25, 3
      %p85 = por %p83, %p84
      %p86 = scmp.ne.s32.totalorder %s75, %s76
      %p87 = scmp.eq.s32.totalorder %s25, 0
      %p88 = por %p86, %p87
      %p89 = scmp.ne.s32.totalorder %s75, %s76
      %p90 = scmp.eq.s32.totalorder %s26, 3
      %p91 = por %p89, %p90
      %p93 = scmp.ne.s32.totalorder %s76, %s92
      %p94 = scmp.eq.s32.totalorder %s26, 0
      %p95 = por %p93, %p94
      %s97 = sadd.s32 %s96, 1
      %p100 = scmp.eq.s32.totalorder %s20, 3
      %p101 = scmp.ne.s32.totalorder %s96, %s98
      %p102 = scmp.eq.s32.totalorder %s20, 0
      %p103 = por %p101, %p102
      %p104 = scmp.ne.s32.totalorder %s96, %s98
      %p105 = scmp.eq.s32.totalorder %s25, 3
      %p106 = por %p104, %p105
      %p107 = scmp.ne.s32.totalorder %s98, %s99
      %p108 = scmp.eq.s32.totalorder %s25, 0
      %p109 = por %p107, %p108
      %p110 = scmp.ne.s32.totalorder %s98, %s99
      %p111 = scmp.eq.s32.totalorder %s26, 3
      %p112 = por %p110, %p111
      %p114 = scmp.ne.s32.totalorder %s99, %s113
      %p115 = scmp.eq.s32.totalorder %s26, 0
      %p116 = por %p114, %p115
      %s118 = sadd.s32 %s117, 1
      %p121 = scmp.eq.s32.totalorder %s20, 3
      %p122 = scmp.ne.s32.totalorder %s117, %s119
      %p123 = scmp.eq.s32.totalorder %s20, 0
      %p124 = por %p122, %p123
      %p125 = scmp.ne.s32.totalorder %s117, %s119
      %p126 = scmp.eq.s32.totalorder %s25, 3
      %p127 = por %p125, %p126
      %p128 = scmp.ne.s32.totalorder %s119, %s120
      %p129 = scmp.eq.s32.totalorder %s25, 0
      %p130 = por %p128, %p129
      %p131 = scmp.ne.s32.totalorder %s119, %s120
      %p132 = scmp.eq.s32.totalorder %s26, 3
      %p133 = por %p131, %p132
      %p135 = scmp.ne.s32.totalorder %s120, %s134
      %p136 = scmp.eq.s32.totalorder %s26, 0
      %p137 = por %p135, %p136
      %s138 = ssub.s32 %s27, %s39
      %s139 = ssub.s32 %s28, %s35
      %s140 = sor.u32 %s138, %s139
      %p141 = scmp.eq.s32.totalorder %s140, 0
      %s143 = sadd.s32 %s142, 1
      %s144 = scalar_select %p141, %s142, %s143
      %p147 = pneg %p141
      %p148 = scmp.eq.s32.totalorder %s20, 3
      %p149 = por %p147, %p148
      %p150 = scmp.ne.s32.totalorder %s142, %s145
      %p151 = scmp.eq.s32.totalorder %s20, 0
      %p152 = por %p150, %p151
      %p153 = scmp.ne.s32.totalorder %s142, %s145
      %p154 = scmp.eq.s32.totalorder %s25, 3
      %p155 = por %p153, %p154
      %p156 = scmp.ne.s32.totalorder %s145, %s146
      %p157 = scmp.eq.s32.totalorder %s25, 0
      %p158 = por %p156, %p157
      %p159 = scmp.ne.s32.totalorder %s145, %s146
      %p160 = scmp.eq.s32.totalorder %s26, 3
      %p161 = por %p159, %p160
      %p163 = scmp.ne.s32.totalorder %s146, %s162
      %p164 = scmp.eq.s32.totalorder %s26, 0
      %p165 = por %p163, %p164
      %p166 = scmp.le.s32.totalorder 1, %s20
      %p167 = scmp.lt.s32.totalorder %s20, 5
      %p168 = pnand %p166, %p167
      %p169 = pneg %p168
      // Predicated region
      $region9: #{tpu_custom_call.1} parent=5 // pred_check
        _
      $region10: #{tpu_custom_call.1} parent=5 // pred_check_branch
        %171 = sbr.rel (%p168) target = $region12
      $region11: #{tpu_custom_call.1} parent=5 // pred_region
        %s172 = ssub.s32 %s20, 1
        // Predicated region
        $region13: #{tpu_custom_call.1} parent=11 // pred_check
          %p173 = pneg %p109
        $region14: #{tpu_custom_call.1} parent=11 // pred_check_branch
          %175 = sbr.rel (%p173) target = $region16
        $region15: #{tpu_custom_call.1} parent=11 // pred_region
          %s177 = ssub.s32 576, 576
          %178 = vsyncadd [#allocation7], %s177
          %s179 = sshll.u32 [#allocation8], 4
          %s180 = int_to_ptr.vmem [resolvable:$true] %s179
          %185 = dma.hbm_to_vmem [thread:$0]  %s2, 576, %s180, [#allocation7], 64, 64, 4
        $region16: #{tpu_custom_call.1} parent=11 // pred_fallthru
          _
        // Predicated region
        $region17: #{tpu_custom_call.1} parent=11 // pred_check
          %p186 = pneg %p130
        $region18: #{tpu_custom_call.1} parent=11 // pred_check_branch
          %188 = sbr.rel (%p186) target = $region20
        $region19: #{tpu_custom_call.1} parent=11 // pred_region
          %s190 = ssub.s32 64, 64
          %191 = vsyncadd [#allocation10], %s190
          %s193 = sshll.u32 [#allocation9], 4
          %s194 = int_to_ptr.vmem [resolvable:$true] %s193
          %196 = dma.hbm_to_vmem [thread:$0]  %s3, 64, %s194, [#allocation10]
        $region20: #{tpu_custom_call.1} parent=11 // pred_fallthru
          _
      $region12: #{tpu_custom_call.1} parent=5 // pred_fallthru
        _
      %p197 = scmp.lt.s32.totalorder %s20, 4
      // Predicated region
      $region21: #{tpu_custom_call.1} parent=5 // pred_check
        %p198 = pneg %p197
      $region22: #{tpu_custom_call.1} parent=5 // pred_check_branch
        %200 = sbr.rel (%p198) target = $region24
      $region23: #{tpu_custom_call.1} parent=5 // pred_region
        // Predicated region
        $region25: #{tpu_custom_call.1} parent=23 // pred_check
          %p201 = pneg %p54
        $region26: #{tpu_custom_call.1} parent=23 // pred_check_branch
          %203 = sbr.rel (%p201) target = $region28
        $region27: #{tpu_custom_call.1} parent=23 // pred_region
          %s204 = sand.u32 %s44, 1
          %s205 = scalar_lea.sflag [#allocation4], %s204
          %s206 = sand.u32 %s44, 1
          %s207 = smul.addr %s206, 4
          %s208 = scalar_lea.vmem [#allocation3], %s207
          %s210 = ssub.s32 64, 64
          %211 = vsyncadd %s205, %s210
          %s212 = smul.addr %s27, 2
          %s213 = sadd.s32 %s28, %s212
          %s214 = smul.addr %s213, 64
          %s215 = scalar_lea.hbm %s0, %s214
          %s217 = sshll.u32 %s208, 4
          %s218 = int_to_ptr.vmem [resolvable:$true] %s217
          %220 = dma.hbm_to_vmem [thread:$0]  %s215, 64, %s218, %s205
        $region28: #{tpu_custom_call.1} parent=23 // pred_fallthru
          _
        // Predicated region
        $region29: #{tpu_custom_call.1} parent=23 // pred_check
          %p221 = pneg %p82
        $region30: #{tpu_custom_call.1} parent=23 // pred_check_branch
          %223 = sbr.rel (%p221) target = $region32
        $region31: #{tpu_custom_call.1} parent=23 // pred_region
          %s224 = sand.u32 %s20, 1
          %s225 = scalar_lea.sflag [#allocation7], %s224
          %s226 = sand.u32 %s72, 1
          %s227 = smul.addr %s226, 4
          %s228 = scalar_lea.vmem [#allocation6], %s227
          %s230 = ssub.s32 64, 64
          %231 = vsyncadd %s225, %s230
          %s232 = smul.addr %s27, 2
          %s233 = sadd.s32 %s28, %s232
          %s234 = smul.addr %s233, 64
          %s235 = scalar_lea.hbm %s1, %s234
          %s237 = sshll.u32 %s228, 4
          %s238 = int_to_ptr.vmem [resolvable:$true] %s237
          %240 = dma.hbm_to_vmem [thread:$0]  %s235, 64, %s238, %s225
        $region32: #{tpu_custom_call.1} parent=23 // pred_fallthru
          _
      $region24: #{tpu_custom_call.1} parent=5 // pred_fallthru
        _
      %p241 = scmp.le.s32.totalorder 1, %s20
      %p242 = scmp.lt.s32.totalorder %s20, 5
      %p243 = pnand %p241, %p242
      %p244 = pneg %p243
      // Predicated region
      $region33: #{tpu_custom_call.1} parent=5 // pred_check
        _
      $region34: #{tpu_custom_call.1} parent=5 // pred_check_branch
        %246 = sbr.rel (%p243) target = $region36
      $region35: #{tpu_custom_call.1} parent=5 // pred_region
        %s247 = ssub.s32 %s20, 1
        %s248 = sand.u32 %s47, 1
        %s249 = scalar_lea.sflag [#allocation4], %s248
        %s250 = sand.u32 %s47, 1
        %s251 = smul.addr %s250, 4
        %s252 = scalar_lea.vmem [#allocation3], %s251
        // Predicated region
        $region37: #{tpu_custom_call.1} parent=35 // pred_check
          %p253 = pneg %p60
        $region38: #{tpu_custom_call.1} parent=35 // pred_check_branch
          %255 = sbr.rel (%p253) target = $region40
        $region39: #{tpu_custom_call.1} parent=35 // pred_region
          %256 = dma.done %s249, 64
        $region40: #{tpu_custom_call.1} parent=35 // pred_fallthru
          _
        %s257 = sand.u32 %s25, 1
        %s258 = scalar_lea.sflag [#allocation7], %s257
        %s259 = sand.u32 %s75, 1
        %s260 = smul.addr %s259, 4
        %s261 = scalar_lea.vmem [#allocation6], %s260
        // Predicated region
        $region41: #{tpu_custom_call.1} parent=35 // pred_check
          %p262 = pneg %p88
        $region42: #{tpu_custom_call.1} parent=35 // pred_check_branch
          %264 = sbr.rel (%p262) target = $region44
        $region43: #{tpu_custom_call.1} parent=35 // pred_region
          %265 = dma.done %s258, 64
        $region44: #{tpu_custom_call.1} parent=35 // pred_fallthru
          _
        // Predicated region
        $region45: #{tpu_custom_call.1} parent=35 // pred_check
          %p266 = pneg %p109
        $region46: #{tpu_custom_call.1} parent=35 // pred_check_branch
          %268 = sbr.rel (%p266) target = $region48
        $region47: #{tpu_custom_call.1} parent=35 // pred_region
          %269 = dma.done [#allocation7], 576
        $region48: #{tpu_custom_call.1} parent=35 // pred_fallthru
          _
        // Predicated region
        $region49: #{tpu_custom_call.1} parent=35 // pred_check
          %p270 = pneg %p130
        $region50: #{tpu_custom_call.1} parent=35 // pred_check_branch
          %272 = sbr.rel (%p270) target = $region52
        $region51: #{tpu_custom_call.1} parent=35 // pred_region
          %273 = dma.done [#allocation10], 64
        $region52: #{tpu_custom_call.1} parent=35 // pred_fallthru
          _
        %s274 = sand.u32 %s47, 1
        %s275 = scalar_lea.sflag [#allocation4], %s274
        %s276 = sand.u32 %s47, 1
        %s277 = smul.addr %s276, 4
        %s278 = scalar_lea.vmem [#allocation3], %s277
        %p279 = pneg %p60
        %p280 = pneg %p57
        %s281 = sand.u32 %s25, 1
        %s282 = scalar_lea.sflag [#allocation7], %s281
        %s283 = sand.u32 %s75, 1
        %s284 = smul.addr %s283, 4
        %s285 = scalar_lea.vmem [#allocation6], %s284
        %p286 = pneg %p88
        %p287 = pneg %p85
        %p288 = pneg %p109
        %p289 = pneg %p106
        %p290 = pneg %p130
        %p291 = pneg %p127
        %p292 = pneg %p158
        %p293 = pneg %p155
        %s294 = sand.u32 %s145, 1
        %s295 = scalar_lea.sflag [#allocation5], %s294
        %s296 = sand.u32 %s145, 1
        %s297 = smul.addr %s296, 4
        %s298 = scalar_lea.vmem [#allocation11], %s297
        %v299 = vld [vmem:[%s261] sm:$0xf]
        %301 = vrot.lane.b32.xlu0 %v299, 112
        %v302 = vpop.permute.xlu0 %301
        %vm304 = vcmask 1044352
        %305 = vst.msk [vmem:[#allocation2] sm:$0xf] %vm304, %v302
        %v306 = vld [vmem:[%s252] sm:$0xf]
        %307 = vst [vmem:[#allocation2 + $0x4] sm:$0xf] %v306
        %vm308 = vcmask 125952
        %309 = vst.msk [vmem:[#allocation2 + $0x8] sm:$0xf] %vm308, %v302
        %v310 = vlaneseq
        %v311 = vand.u32 %v310, 127
        %vm312 = vcmp.lt.s32.totalorder %v311, 0
        %v313 = vsub.s32 0, %v311
        %v314 = vsel %vm312, %v313, %v311
        %v315 = vshrl.u32 %v314, 4
        %v316 = vand.u32 %v314, 15
        %v317 = vsub.s32 0, %v316
        %v318 = vsel %vm312, %v317, %v316
        %vm319 = vcmp.ne.s32.totalorder %v318, 0
        %vm320 = vcmp.lt.s32.totalorder %v318, 0
        %vm321 = vmand %vm320, %vm319
        %v322 = vadd.s32 %v318, 16
        %v323 = vsel %vm321, %v322, %v318
        %vm324 = vcmp.ne.s32.totalorder %v323, 0
        %vm325 = vcmp.ne.s32.totalorder %v323, 15
        %v326 = vld [vmem:[#allocation2] sm:$0xff]
        %v327 = vsel %vm324, 1, 0
        %vm328 = vcmp.eq.s32.totalorder %v327, 1
        %v330 = vcombine.high %v326, %v326
        %331 = vrot.lane.b32.xlu0 %v326, 17
        %v332 = vpop.permute.xlu0 %331
        %333 = vrot.lane.b32.xlu0 %v330, 17
        %v334 = vpop.permute.xlu0 %333
        %vm335 = vcmask 138240
        %v336 = vsel %vm335, %v332, %v334
        %v338 = vsel %vm328, %v336, 0.0
        %v339 = vld [vmem:[#allocation8] sm:$0x7]
        %v340 = vld [vmem:[#allocation9] sm:$0x7]
        %342 = vset.pattern.permute.xlu0 0
        %343 = vperm.xlu0 %342, %v340
        %v344 = vpop.permute.xlu0 %343
        %vm346 = vcmask 31744
        %v348 = vsel %vm346, %v339, 0
        %vm350 = vcmask 1043456
        %v352 = vsel %vm350, %v338, 0
        %354 = vmatprep.subr.mxu0 0.0
        %355 = vmatpush1.msra.mxu0 %v352
        %356 = vmatprep.subr.mxu0 0.0
        %357 = vmatpush1.msra.mxu0 0.0
        %358 = vmatprep.subr.mxu0 0.0
        %359 = vmatpush1.msra.mxu0 0.0
        %360 = vmatprep.subr.mxu0 0.0
        %361 = vmatpush1.msra.mxu0 0.0
        %362 = vmatprep.subr.mxu0 0.0
        %363 = vmatpush1.msra.mxu0 0.0
        %364 = vmatprep.subr.mxu0 0.0
        %365 = vmatpush1.msra.mxu0 0.0
        %366 = vmatprep.subr.mxu0 0.0
        %367 = vmatpush1.msra.mxu0 0.0
        %368 = vmatprep.subr.mxu0 0.0
        %369 = vmatpush1.msra.mxu0 0.0
        %370 = vmatprep.subr.mxu0 0.0
        %371 = vmatpush1.msra.mxu0 0.0
        %372 = vmatprep.subr.mxu0 0.0
        %373 = vmatpush1.msra.mxu0 0.0
        %374 = vmatprep.subr.mxu0 0.0
        %375 = vmatpush1.msra.mxu0 0.0
        %376 = vmatprep.subr.mxu0 0.0
        %377 = vmatpush1.msra.mxu0 0.0
        %378 = vmatprep.subr.mxu0 0.0
        %379 = vmatpush1.msra.mxu0 0.0
        %380 = vmatprep.subr.mxu0 0.0
        %381 = vmatpush1.msra.mxu0 0.0
        %382 = vmatprep.subr.mxu0 0.0
        %383 = vmatpush1.msra.mxu0 0.0
        %384 = vmatprep.subr.mxu0 0.0
        %385 = vmatpush1.msra.mxu0 0.0
        %386 = vmatprep.subr.mxu0 0.0
        %387 = vmatpush1.msra.mxu0 0.0
        %388 = vmatprep.subr.mxu0 0.0
        %389 = vmatpush1.msra.mxu0 0.0
        %390 = vmatprep.subr.mxu0 0.0
        %391 = vmatpush1.msra.mxu0 0.0
        %392 = vmatprep.subr.mxu0 0.0
        %393 = vmatpush1.msra.mxu0 0.0
        %394 = vmatprep.subr.mxu0 0.0
        %395 = vmatpush1.msra.mxu0 0.0
        %396 = vmatprep.subr.mxu0 0.0
        %397 = vmatpush1.msra.mxu0 0.0
        %398 = vmatprep.subr.mxu0 0.0
        %399 = vmatpush1.msra.mxu0 0.0
        %400 = vmatprep.subr.mxu0 0.0
        %401 = vmatpush1.msra.mxu0 0.0
        %402 = vmatprep.subr.mxu0 0.0
        %403 = vmatpush1.msra.mxu0 0.0
        %404 = vmatprep.subr.mxu0 0.0
        %405 = vmatpush1.msra.mxu0 0.0
        %406 = vmatprep.subr.mxu0 0.0
        %407 = vmatpush1.msra.mxu0 0.0
        %408 = vmatprep.subr.mxu0 0.0
        %409 = vmatpush1.msra.mxu0 0.0
        %410 = vmatprep.subr.mxu0 0.0
        %411 = vmatpush1.msra.mxu0 0.0
        %412 = vmatprep.subr.mxu0 0.0
        %413 = vmatpush1.msra.mxu0 0.0
        %414 = vmatprep.subr.mxu0 0.0
        %415 = vmatpush1.msra.mxu0 0.0
        %416 = vmatprep.subr.mxu0 0.0
        %417 = vmatpush1.msra.mxu0 0.0
        %418 = vmatprep.mubr.f32.mxu0 0.0
        %419 = vmatmul.mubr.f32.gmra.mrb[0].mxu0 %v348
        %v420 = vpop.f32.mrb[0].mxu0
        %v421 = vadd.f32 %v344, %v420
        %v422 = vpop.f32.mrb[0].mxu0
        %423 = vdwg.mxu0
        %v424 = vld [vmem:[#allocation2] sm:$0xff]
        %s425 = scalar_lea.vmem [#allocation8], 4
        %v426 = vld [vmem:[%s425] sm:$0x7]
        %v428 = vcombine.high %v424, %v424
        %429 = vrot.lane.b32.xlu0 %v424, 16
        %v430 = vpop.permute.xlu0 %429
        %431 = vrot.lane.b32.xlu0 %v428, 16
        %v432 = vpop.permute.xlu0 %431
        %vm433 = vcmask 130048
        %v434 = vsel %vm433, %v430, %v432
        %v436 = vsel %vm346, %v426, 0
        %v438 = vsel %vm350, %v434, 0
        %440 = vmatprep.subr.mxu0 0.0
        %441 = vmatpush1.msra.mxu0 %v438
        %442 = vmatprep.subr.mxu0 0.0
        %443 = vmatpush1.msra.mxu0 0.0
        %444 = vmatprep.subr.mxu0 0.0
        %445 = vmatpush1.msra.mxu0 0.0
        %446 = vmatprep.subr.mxu0 0.0
        %447 = vmatpush1.msra.mxu0 0.0
        %448 = vmatprep.subr.mxu0 0.0
        %449 = vmatpush1.msra.mxu0 0.0
        %450 = vmatprep.subr.mxu0 0.0
        %451 = vmatpush1.msra.mxu0 0.0
        %452 = vmatprep.subr.mxu0 0.0
        %453 = vmatpush1.msra.mxu0 0.0
        %454 = vmatprep.subr.mxu0 0.0
        %455 = vmatpush1.msra.mxu0 0.0
        %456 = vmatprep.subr.mxu0 0.0
        %457 = vmatpush1.msra.mxu0 0.0
        %458 = vmatprep.subr.mxu0 0.0
        %459 = vmatpush1.msra.mxu0 0.0
        %460 = vmatprep.subr.mxu0 0.0
        %461 = vmatpush1.msra.mxu0 0.0
        %462 = vmatprep.subr.mxu0 0.0
        %463 = vmatpush1.msra.mxu0 0.0
        %464 = vmatprep.subr.mxu0 0.0
        %465 = vmatpush1.msra.mxu0 0.0
        %466 = vmatprep.subr.mxu0 0.0
        %467 = vmatpush1.msra.mxu0 0.0
        %468 = vmatprep.subr.mxu0 0.0
        %469 = vmatpush1.msra.mxu0 0.0
        %470 = vmatprep.subr.mxu0 0.0
        %471 = vmatpush1.msra.mxu0 0.0
        %472 = vmatprep.subr.mxu0 0.0
        %473 = vmatpush1.msra.mxu0 0.0
        %474 = vmatprep.subr.mxu0 0.0
        %475 = vmatpush1.msra.mxu0 0.0
        %476 = vmatprep.subr.mxu0 0.0
        %477 = vmatpush1.msra.mxu0 0.0
        %478 = vmatprep.subr.mxu0 0.0
        %479 = vmatpush1.msra.mxu0 0.0
        %480 = vmatprep.subr.mxu0 0.0
        %481 = vmatpush1.msra.mxu0 0.0
        %482 = vmatprep.subr.mxu0 0.0
        %483 = vmatpush1.msra.mxu0 0.0
        %484 = vmatprep.subr.mxu0 0.0
        %485 = vmatpush1.msra.mxu0 0.0
        %486 = vmatprep.subr.mxu0 0.0
        %487 = vmatpush1.msra.mxu0 0.0
        %488 = vmatprep.subr.mxu0 0.0
        %489 = vmatpush1.msra.mxu0 0.0
        %490 = vmatprep.subr.mxu0 0.0
        %491 = vmatpush1.msra.mxu0 0.0
        %492 = vmatprep.subr.mxu0 0.0
        %493 = vmatpush1.msra.mxu0 0.0
        %494 = vmatprep.subr.mxu0 0.0
        %495 = vmatpush1.msra.mxu0 0.0
        %496 = vmatprep.subr.mxu0 0.0
        %497 = vmatpush1.msra.mxu0 0.0
        %498 = vmatprep.subr.mxu0 0.0
        %499 = vmatpush1.msra.mxu0 0.0
        %500 = vmatprep.subr.mxu0 0.0
        %501 = vmatpush1.msra.mxu0 0.0
        %502 = vmatprep.subr.mxu0 0.0
        %503 = vmatpush1.msra.mxu0 0.0
        %504 = vmatprep.mubr.f32.mxu0 0.0
        %505 = vmatmul.mubr.f32.gmra.mrb[0].mxu0 %v436
        %v506 = vpop.f32.mrb[0].mxu0
        %v507 = vadd.f32 0.0, %v506
        %v508 = vpop.f32.mrb[0].mxu0
        %509 = vdwg.mxu0
        %v510 = vadd.f32 %v421, %v507
        %v511 = vld [vmem:[#allocation2] sm:$0xff]
        %v512 = vsel %vm325, 1, 0
        %vm513 = vcmp.eq.s32.totalorder %v512, 1
        %v515 = vcombine.high %v511, %v511
        %516 = vrot.lane.b32.xlu0 %v511, 15
        %v517 = vpop.permute.xlu0 %516
        %518 = vrot.lane.b32.xlu0 %v515, 15
        %v519 = vpop.permute.xlu0 %518
        %vm520 = vcmask 121856
        %v521 = vsel %vm520, %v517, %v519
        %v523 = vsel %vm513, %v521, 0.0
        %s524 = scalar_lea.vmem [#allocation8], 8
        %v525 = vld [vmem:[%s524] sm:$0x7]
        %v527 = vsel %vm346, %v525, 0
        %v530 = vsel %vm350, %v523, 0
        %532 = vmatprep.subr.mxu0 0.0
        %533 = vmatpush1.msra.mxu0 %v530
        %534 = vmatprep.subr.mxu0 0.0
        %535 = vmatpush1.msra.mxu0 0.0
        %536 = vmatprep.subr.mxu0 0.0
        %537 = vmatpush1.msra.mxu0 0.0
        %538 = vmatprep.subr.mxu0 0.0
        %539 = vmatpush1.msra.mxu0 0.0
        %540 = vmatprep.subr.mxu0 0.0
        %541 = vmatpush1.msra.mxu0 0.0
        %542 = vmatprep.subr.mxu0 0.0
        %543 = vmatpush1.msra.mxu0 0.0
        %544 = vmatprep.subr.mxu0 0.0
        %545 = vmatpush1.msra.mxu0 0.0
        %546 = vmatprep.subr.mxu0 0.0
        %547 = vmatpush1.msra.mxu0 0.0
        %548 = vmatprep.subr.mxu0 0.0
        %549 = vmatpush1.msra.mxu0 0.0
        %550 = vmatprep.subr.mxu0 0.0
        %551 = vmatpush1.msra.mxu0 0.0
        %552 = vmatprep.subr.mxu0 0.0
        %553 = vmatpush1.msra.mxu0 0.0
        %554 = vmatprep.subr.mxu0 0.0
        %555 = vmatpush1.msra.mxu0 0.0
        %556 = vmatprep.subr.mxu0 0.0
        %557 = vmatpush1.msra.mxu0 0.0
        %558 = vmatprep.subr.mxu0 0.0
        %559 = vmatpush1.msra.mxu0 0.0
        %560 = vmatprep.subr.mxu0 0.0
        %561 = vmatpush1.msra.mxu0 0.0
        %562 = vmatprep.subr.mxu0 0.0
        %563 = vmatpush1.msra.mxu0 0.0
        %564 = vmatprep.subr.mxu0 0.0
        %565 = vmatpush1.msra.mxu0 0.0
        %566 = vmatprep.subr.mxu0 0.0
        %567 = vmatpush1.msra.mxu0 0.0
        %568 = vmatprep.subr.mxu0 0.0
        %569 = vmatpush1.msra.mxu0 0.0
        %570 = vmatprep.subr.mxu0 0.0
        %571 = vmatpush1.msra.mxu0 0.0
        %572 = vmatprep.subr.mxu0 0.0
        %573 = vmatpush1.msra.mxu0 0.0
        %574 = vmatprep.subr.mxu0 0.0
        %575 = vmatpush1.msra.mxu0 0.0
        %576 = vmatprep.subr.mxu0 0.0
        %577 = vmatpush1.msra.mxu0 0.0
        %578 = vmatprep.subr.mxu0 0.0
        %579 = vmatpush1.msra.mxu0 0.0
        %580 = vmatprep.subr.mxu0 0.0
        %581 = vmatpush1.msra.mxu0 0.0
        %582 = vmatprep.subr.mxu0 0.0
        %583 = vmatpush1.msra.mxu0 0.0
        %584 = vmatprep.subr.mxu0 0.0
        %585 = vmatpush1.msra.mxu0 0.0
        %586 = vmatprep.subr.mxu0 0.0
        %587 = vmatpush1.msra.mxu0 0.0
        %588 = vmatprep.subr.mxu0 0.0
        %589 = vmatpush1.msra.mxu0 0.0
        %590 = vmatprep.subr.mxu0 0.0
        %591 = vmatpush1.msra.mxu0 0.0
        %592 = vmatprep.subr.mxu0 0.0
        %593 = vmatpush1.msra.mxu0 0.0
        %594 = vmatprep.subr.mxu0 0.0
        %595 = vmatpush1.msra.mxu0 0.0
        %596 = vmatprep.mubr.f32.mxu0 0.0
        %597 = vmatmul.mubr.f32.gmra.mrb[0].mxu0 %v527
        %v598 = vpop.f32.mrb[0].mxu0
        %v599 = vadd.f32 0.0, %v598
        %v600 = vpop.f32.mrb[0].mxu0
        %601 = vdwg.mxu0
        %v602 = vadd.f32 %v510, %v599
        %v603 = vld [vmem:[#allocation2] sm:$0xff]
        %v605 = vcombine.high %v603, %v603
        %606 = vrot.lane.b32.xlu0 %v603, 1
        %v607 = vpop.permute.xlu0 %606
        %608 = vrot.lane.b32.xlu0 %v605, 1
        %v609 = vpop.permute.xlu0 %608
        %vm610 = vcmask 7168
        %v611 = vsel %vm610, %v607, %v609
        %v613 = vsel %vm328, %v611, 0.0
        %s614 = scalar_lea.vmem [#allocation8], 12
        %v615 = vld [vmem:[%s614] sm:$0x7]
        %v617 = vsel %vm346, %v615, 0
        %v620 = vsel %vm350, %v613, 0
        %622 = vmatprep.subr.mxu0 0.0
        %623 = vmatpush1.msra.mxu0 %v620
        %624 = vmatprep.subr.mxu0 0.0
        %625 = vmatpush1.msra.mxu0 0.0
        %626 = vmatprep.subr.mxu0 0.0
        %627 = vmatpush1.msra.mxu0 0.0
        %628 = vmatprep.subr.mxu0 0.0
        %629 = vmatpush1.msra.mxu0 0.0
        %630 = vmatprep.subr.mxu0 0.0
        %631 = vmatpush1.msra.mxu0 0.0
        %632 = vmatprep.subr.mxu0 0.0
        %633 = vmatpush1.msra.mxu0 0.0
        %634 = vmatprep.subr.mxu0 0.0
        %635 = vmatpush1.msra.mxu0 0.0
        %636 = vmatprep.subr.mxu0 0.0
        %637 = vmatpush1.msra.mxu0 0.0
        %638 = vmatprep.subr.mxu0 0.0
        %639 = vmatpush1.msra.mxu0 0.0
        %640 = vmatprep.subr.mxu0 0.0
        %641 = vmatpush1.msra.mxu0 0.0
        %642 = vmatprep.subr.mxu0 0.0
        %643 = vmatpush1.msra.mxu0 0.0
        %644 = vmatprep.subr.mxu0 0.0
        %645 = vmatpush1.msra.mxu0 0.0
        %646 = vmatprep.subr.mxu0 0.0
        %647 = vmatpush1.msra.mxu0 0.0
        %648 = vmatprep.subr.mxu0 0.0
        %649 = vmatpush1.msra.mxu0 0.0
        %650 = vmatprep.subr.mxu0 0.0
        %651 = vmatpush1.msra.mxu0 0.0
        %652 = vmatprep.subr.mxu0 0.0
        %653 = vmatpush1.msra.mxu0 0.0
        %654 = vmatprep.subr.mxu0 0.0
        %655 = vmatpush1.msra.mxu0 0.0
        %656 = vmatprep.subr.mxu0 0.0
        %657 = vmatpush1.msra.mxu0 0.0
        %658 = vmatprep.subr.mxu0 0.0
        %659 = vmatpush1.msra.mxu0 0.0
        %660 = vmatprep.subr.mxu0 0.0
        %661 = vmatpush1.msra.mxu0 0.0
        %662 = vmatprep.subr.mxu0 0.0
        %663 = vmatpush1.msra.mxu0 0.0
        %664 = vmatprep.subr.mxu0 0.0
        %665 = vmatpush1.msra.mxu0 0.0
        %666 = vmatprep.subr.mxu0 0.0
        %667 = vmatpush1.msra.mxu0 0.0
        %668 = vmatprep.subr.mxu0 0.0
        %669 = vmatpush1.msra.mxu0 0.0
        %670 = vmatprep.subr.mxu0 0.0
        %671 = vmatpush1.msra.mxu0 0.0
        %672 = vmatprep.subr.mxu0 0.0
        %673 = vmatpush1.msra.mxu0 0.0
        %674 = vmatprep.subr.mxu0 0.0
        %675 = vmatpush1.msra.mxu0 0.0
        %676 = vmatprep.subr.mxu0 0.0
        %677 = vmatpush1.msra.mxu0 0.0
        %678 = vmatprep.subr.mxu0 0.0
        %679 = vmatpush1.msra.mxu0 0.0
        %680 = vmatprep.subr.mxu0 0.0
        %681 = vmatpush1.msra.mxu0 0.0
        %682 = vmatprep.subr.mxu0 0.0
        %683 = vmatpush1.msra.mxu0 0.0
        %684 = vmatprep.subr.mxu0 0.0
        %685 = vmatpush1.msra.mxu0 0.0
        %686 = vmatprep.mubr.f32.mxu0 0.0
        %687 = vmatmul.mubr.f32.gmra.mrb[0].mxu0 %v617
        %v688 = vpop.f32.mrb[0].mxu0
        %v689 = vadd.f32 0.0, %v688
        %v690 = vpop.f32.mrb[0].mxu0
        %691 = vdwg.mxu0
        %v692 = vadd.f32 %v602, %v689
        %v693 = vld [vmem:[#allocation2 + $0x4] sm:$0xf]
        %s694 = scalar_lea.vmem [#allocation8], 16
        %v695 = vld [vmem:[%s694] sm:$0x7]
        %v697 = vsel %vm346, %v695, 0
        %v700 = vsel %vm350, %v693, 0
        %702 = vmatprep.subr.mxu0 0.0
        %703 = vmatpush1.msra.mxu0 %v700
        %704 = vmatprep.subr.mxu0 0.0
        %705 = vmatpush1.msra.mxu0 0.0
        %706 = vmatprep.subr.mxu0 0.0
        %707 = vmatpush1.msra.mxu0 0.0
        %708 = vmatprep.subr.mxu0 0.0
        %709 = vmatpush1.msra.mxu0 0.0
        %710 = vmatprep.subr.mxu0 0.0
        %711 = vmatpush1.msra.mxu0 0.0
        %712 = vmatprep.subr.mxu0 0.0
        %713 = vmatpush1.msra.mxu0 0.0
        %714 = vmatprep.subr.mxu0 0.0
        %715 = vmatpush1.msra.mxu0 0.0
        %716 = vmatprep.subr.mxu0 0.0
        %717 = vmatpush1.msra.mxu0 0.0
        %718 = vmatprep.subr.mxu0 0.0
        %719 = vmatpush1.msra.mxu0 0.0
        %720 = vmatprep.subr.mxu0 0.0
        %721 = vmatpush1.msra.mxu0 0.0
        %722 = vmatprep.subr.mxu0 0.0
        %723 = vmatpush1.msra.mxu0 0.0
        %724 = vmatprep.subr.mxu0 0.0
        %725 = vmatpush1.msra.mxu0 0.0
        %726 = vmatprep.subr.mxu0 0.0
        %727 = vmatpush1.msra.mxu0 0.0
        %728 = vmatprep.subr.mxu0 0.0
        %729 = vmatpush1.msra.mxu0 0.0
        %730 = vmatprep.subr.mxu0 0.0
        %731 = vmatpush1.msra.mxu0 0.0
        %732 = vmatprep.subr.mxu0 0.0
        %733 = vmatpush1.msra.mxu0 0.0
        %734 = vmatprep.subr.mxu0 0.0
        %735 = vmatpush1.msra.mxu0 0.0
        %736 = vmatprep.subr.mxu0 0.0
        %737 = vmatpush1.msra.mxu0 0.0
        %738 = vmatprep.subr.mxu0 0.0
        %739 = vmatpush1.msra.mxu0 0.0
        %740 = vmatprep.subr.mxu0 0.0
        %741 = vmatpush1.msra.mxu0 0.0
        %742 = vmatprep.subr.mxu0 0.0
        %743 = vmatpush1.msra.mxu0 0.0
        %744 = vmatprep.subr.mxu0 0.0
        %745 = vmatpush1.msra.mxu0 0.0
        %746 = vmatprep.subr.mxu0 0.0
        %747 = vmatpush1.msra.mxu0 0.0
        %748 = vmatprep.subr.mxu0 0.0
        %749 = vmatpush1.msra.mxu0 0.0
        %750 = vmatprep.subr.mxu0 0.0
        %751 = vmatpush1.msra.mxu0 0.0
        %752 = vmatprep.subr.mxu0 0.0
        %753 = vmatpush1.msra.mxu0 0.0
        %754 = vmatprep.subr.mxu0 0.0
        %755 = vmatpush1.msra.mxu0 0.0
        %756 = vmatprep.subr.mxu0 0.0
        %757 = vmatpush1.msra.mxu0 0.0
        %758 = vmatprep.subr.mxu0 0.0
        %759 = vmatpush1.msra.mxu0 0.0
        %760 = vmatprep.subr.mxu0 0.0
        %761 = vmatpush1.msra.mxu0 0.0
        %762 = vmatprep.subr.mxu0 0.0
        %763 = vmatpush1.msra.mxu0 0.0
        %764 = vmatprep.subr.mxu0 0.0
        %765 = vmatpush1.msra.mxu0 0.0
        %766 = vmatprep.mubr.f32.mxu0 0.0
        %767 = vmatmul.mubr.f32.gmra.mrb[0].mxu0 %v697
        %v768 = vpop.f32.mrb[0].mxu0
        %v769 = vadd.f32 0.0, %v768
        %v770 = vpop.f32.mrb[0].mxu0
        %771 = vdwg.mxu0
        %v772 = vadd.f32 %v692, %v769
        %v773 = vld [vmem:[#allocation2 + $0x4] sm:$0xff]
        %v775 = vcombine.high %v773, %v773
        %776 = vrot.lane.b32.xlu0 %v773, 127
        %v777 = vpop.permute.xlu0 %776
        %778 = vrot.lane.b32.xlu0 %v775, 127
        %v779 = vpop.permute.xlu0 %778
        %vm780 = vcmask 1039360
        %v781 = vsel %vm780, %v777, %v779
        %v783 = vsel %vm513, %v781, 0.0
        %s784 = scalar_lea.vmem [#allocation8], 20
        %v785 = vld [vmem:[%s784] sm:$0x7]
        %v787 = vsel %vm346, %v785, 0
        %v790 = vsel %vm350, %v783, 0
        %792 = vmatprep.subr.mxu0 0.0
        %793 = vmatpush1.msra.mxu0 %v790
        %794 = vmatprep.subr.mxu0 0.0
        %795 = vmatpush1.msra.mxu0 0.0
        %796 = vmatprep.subr.mxu0 0.0
        %797 = vmatpush1.msra.mxu0 0.0
        %798 = vmatprep.subr.mxu0 0.0
        %799 = vmatpush1.msra.mxu0 0.0
        %800 = vmatprep.subr.mxu0 0.0
        %801 = vmatpush1.msra.mxu0 0.0
        %802 = vmatprep.subr.mxu0 0.0
        %803 = vmatpush1.msra.mxu0 0.0
        %804 = vmatprep.subr.mxu0 0.0
        %805 = vmatpush1.msra.mxu0 0.0
        %806 = vmatprep.subr.mxu0 0.0
        %807 = vmatpush1.msra.mxu0 0.0
        %808 = vmatprep.subr.mxu0 0.0
        %809 = vmatpush1.msra.mxu0 0.0
        %810 = vmatprep.subr.mxu0 0.0
        %811 = vmatpush1.msra.mxu0 0.0
        %812 = vmatprep.subr.mxu0 0.0
        %813 = vmatpush1.msra.mxu0 0.0
        %814 = vmatprep.subr.mxu0 0.0
        %815 = vmatpush1.msra.mxu0 0.0
        %816 = vmatprep.subr.mxu0 0.0
        %817 = vmatpush1.msra.mxu0 0.0
        %818 = vmatprep.subr.mxu0 0.0
        %819 = vmatpush1.msra.mxu0 0.0
        %820 = vmatprep.subr.mxu0 0.0
        %821 = vmatpush1.msra.mxu0 0.0
        %822 = vmatprep.subr.mxu0 0.0
        %823 = vmatpush1.msra.mxu0 0.0
        %824 = vmatprep.subr.mxu0 0.0
        %825 = vmatpush1.msra.mxu0 0.0
        %826 = vmatprep.subr.mxu0 0.0
        %827 = vmatpush1.msra.mxu0 0.0
        %828 = vmatprep.subr.mxu0 0.0
        %829 = vmatpush1.msra.mxu0 0.0
        %830 = vmatprep.subr.mxu0 0.0
        %831 = vmatpush1.msra.mxu0 0.0
        %832 = vmatprep.subr.mxu0 0.0
        %833 = vmatpush1.msra.mxu0 0.0
        %834 = vmatprep.subr.mxu0 0.0
        %835 = vmatpush1.msra.mxu0 0.0
        %836 = vmatprep.subr.mxu0 0.0
        %837 = vmatpush1.msra.mxu0 0.0
        %838 = vmatprep.subr.mxu0 0.0
        %839 = vmatpush1.msra.mxu0 0.0
        %840 = vmatprep.subr.mxu0 0.0
        %841 = vmatpush1.msra.mxu0 0.0
        %842 = vmatprep.subr.mxu0 0.0
        %843 = vmatpush1.msra.mxu0 0.0
        %844 = vmatprep.subr.mxu0 0.0
        %845 = vmatpush1.msra.mxu0 0.0
        %846 = vmatprep.subr.mxu0 0.0
        %847 = vmatpush1.msra.mxu0 0.0
        %848 = vmatprep.subr.mxu0 0.0
        %849 = vmatpush1.msra.mxu0 0.0
        %850 = vmatprep.subr.mxu0 0.0
        %851 = vmatpush1.msra.mxu0 0.0
        %852 = vmatprep.subr.mxu0 0.0
        %853 = vmatpush1.msra.mxu0 0.0
        %854 = vmatprep.subr.mxu0 0.0
        %855 = vmatpush1.msra.mxu0 0.0
        %856 = vmatprep.mubr.f32.mxu0 0.0
        %857 = vmatmul.mubr.f32.gmra.mrb[0].mxu0 %v787
        %v858 = vpop.f32.mrb[0].mxu0
        %v859 = vadd.f32 0.0, %v858
        %v860 = vpop.f32.mrb[0].mxu0
        %861 = vdwg.mxu0
        %v862 = vadd.f32 %v772, %v859
        %v863 = vld [vmem:[#allocation2 + $0x4] sm:$0xff]
        %v865 = vcombine.high %v863, %v863
        %866 = vrot.lane.b32.xlu0 %v863, 113
        %v867 = vpop.permute.xlu0 %866
        %868 = vrot.lane.b32.xlu0 %v865, 113
        %v869 = vpop.permute.xlu0 %868
        %vm870 = vcmask 924672
        %v871 = vsel %vm870, %v867, %v869
        %v873 = vsel %vm328, %v871, 0.0
        %s874 = scalar_lea.vmem [#allocation8], 24
        %v875 = vld [vmem:[%s874] sm:$0x7]
        %v877 = vsel %vm346, %v875, 0
        %v880 = vsel %vm350, %v873, 0
        %882 = vmatprep.subr.mxu0 0.0
        %883 = vmatpush1.msra.mxu0 %v880
        %884 = vmatprep.subr.mxu0 0.0
        %885 = vmatpush1.msra.mxu0 0.0
        %886 = vmatprep.subr.mxu0 0.0
        %887 = vmatpush1.msra.mxu0 0.0
        %888 = vmatprep.subr.mxu0 0.0
        %889 = vmatpush1.msra.mxu0 0.0
        %890 = vmatprep.subr.mxu0 0.0
        %891 = vmatpush1.msra.mxu0 0.0
        %892 = vmatprep.subr.mxu0 0.0
        %893 = vmatpush1.msra.mxu0 0.0
        %894 = vmatprep.subr.mxu0 0.0
        %895 = vmatpush1.msra.mxu0 0.0
        %896 = vmatprep.subr.mxu0 0.0
        %897 = vmatpush1.msra.mxu0 0.0
        %898 = vmatprep.subr.mxu0 0.0
        %899 = vmatpush1.msra.mxu0 0.0
        %900 = vmatprep.subr.mxu0 0.0
        %901 = vmatpush1.msra.mxu0 0.0
        %902 = vmatprep.subr.mxu0 0.0
        %903 = vmatpush1.msra.mxu0 0.0
        %904 = vmatprep.subr.mxu0 0.0
        %905 = vmatpush1.msra.mxu0 0.0
        %906 = vmatprep.subr.mxu0 0.0
        %907 = vmatpush1.msra.mxu0 0.0
        %908 = vmatprep.subr.mxu0 0.0
        %909 = vmatpush1.msra.mxu0 0.0
        %910 = vmatprep.subr.mxu0 0.0
        %911 = vmatpush1.msra.mxu0 0.0
        %912 = vmatprep.subr.mxu0 0.0
        %913 = vmatpush1.msra.mxu0 0.0
        %914 = vmatprep.subr.mxu0 0.0
        %915 = vmatpush1.msra.mxu0 0.0
        %916 = vmatprep.subr.mxu0 0.0
        %917 = vmatpush1.msra.mxu0 0.0
        %918 = vmatprep.subr.mxu0 0.0
        %919 = vmatpush1.msra.mxu0 0.0
        %920 = vmatprep.subr.mxu0 0.0
        %921 = vmatpush1.msra.mxu0 0.0
        %922 = vmatprep.subr.mxu0 0.0
        %923 = vmatpush1.msra.mxu0 0.0
        %924 = vmatprep.subr.mxu0 0.0
        %925 = vmatpush1.msra.mxu0 0.0
        %926 = vmatprep.subr.mxu0 0.0
        %927 = vmatpush1.msra.mxu0 0.0
        %928 = vmatprep.subr.mxu0 0.0
        %929 = vmatpush1.msra.mxu0 0.0
        %930 = vmatprep.subr.mxu0 0.0
        %931 = vmatpush1.msra.mxu0 0.0
        %932 = vmatprep.subr.mxu0 0.0
        %933 = vmatpush1.msra.mxu0 0.0
        %934 = vmatprep.subr.mxu0 0.0
        %935 = vmatpush1.msra.mxu0 0.0
        %936 = vmatprep.subr.mxu0 0.0
        %937 = vmatpush1.msra.mxu0 0.0
        %938 = vmatprep.subr.mxu0 0.0
        %939 = vmatpush1.msra.mxu0 0.0
        %940 = vmatprep.subr.mxu0 0.0
        %941 = vmatpush1.msra.mxu0 0.0
        %942 = vmatprep.subr.mxu0 0.0
        %943 = vmatpush1.msra.mxu0 0.0
        %944 = vmatprep.subr.mxu0 0.0
        %945 = vmatpush1.msra.mxu0 0.0
        %946 = vmatprep.mubr.f32.mxu0 0.0
        %947 = vmatmul.mubr.f32.gmra.mrb[0].mxu0 %v877
        %v948 = vpop.f32.mrb[0].mxu0
        %v949 = vadd.f32 0.0, %v948
        %v950 = vpop.f32.mrb[0].mxu0
        %951 = vdwg.mxu0
        %v952 = vadd.f32 %v862, %v949
        %v953 = vld [vmem:[#allocation2 + $0x4] sm:$0xff]
        %s954 = scalar_lea.vmem [#allocation8], 28
        %v955 = vld [vmem:[%s954] sm:$0x7]
        %v957 = vcombine.high %v953, %v953
        %958 = vrot.lane.b32.xlu0 %v953, 112
        %v959 = vpop.permute.xlu0 %958
        %960 = vrot.lane.b32.xlu0 %v957, 112
        %v961 = vpop.permute.xlu0 %960
        %vm962 = vcmask 916480
        %v963 = vsel %vm962, %v959, %v961
        %v965 = vsel %vm346, %v955, 0
        %v967 = vsel %vm350, %v963, 0
        %969 = vmatprep.subr.mxu0 0.0
        %970 = vmatpush1.msra.mxu0 %v967
        %971 = vmatprep.subr.mxu0 0.0
        %972 = vmatpush1.msra.mxu0 0.0
        %973 = vmatprep.subr.mxu0 0.0
        %974 = vmatpush1.msra.mxu0 0.0
        %975 = vmatprep.subr.mxu0 0.0
        %976 = vmatpush1.msra.mxu0 0.0
        %977 = vmatprep.subr.mxu0 0.0
        %978 = vmatpush1.msra.mxu0 0.0
        %979 = vmatprep.subr.mxu0 0.0
        %980 = vmatpush1.msra.mxu0 0.0
        %981 = vmatprep.subr.mxu0 0.0
        %982 = vmatpush1.msra.mxu0 0.0
        %983 = vmatprep.subr.mxu0 0.0
        %984 = vmatpush1.msra.mxu0 0.0
        %985 = vmatprep.subr.mxu0 0.0
        %986 = vmatpush1.msra.mxu0 0.0
        %987 = vmatprep.subr.mxu0 0.0
        %988 = vmatpush1.msra.mxu0 0.0
        %989 = vmatprep.subr.mxu0 0.0
        %990 = vmatpush1.msra.mxu0 0.0
        %991 = vmatprep.subr.mxu0 0.0
        %992 = vmatpush1.msra.mxu0 0.0
        %993 = vmatprep.subr.mxu0 0.0
        %994 = vmatpush1.msra.mxu0 0.0
        %995 = vmatprep.subr.mxu0 0.0
        %996 = vmatpush1.msra.mxu0 0.0
        %997 = vmatprep.subr.mxu0 0.0
        %998 = vmatpush1.msra.mxu0 0.0
        %999 = vmatprep.subr.mxu0 0.0
        %1000 = vmatpush1.msra.mxu0 0.0
        %1001 = vmatprep.subr.mxu0 0.0
        %1002 = vmatpush1.msra.mxu0 0.0
        %1003 = vmatprep.subr.mxu0 0.0
        %1004 = vmatpush1.msra.mxu0 0.0
        %1005 = vmatprep.subr.mxu0 0.0
        %1006 = vmatpush1.msra.mxu0 0.0
        %1007 = vmatprep.subr.mxu0 0.0
        %1008 = vmatpush1.msra.mxu0 0.0
        %1009 = vmatprep.subr.mxu0 0.0
        %1010 = vmatpush1.msra.mxu0 0.0
        %1011 = vmatprep.subr.mxu0 0.0
        %1012 = vmatpush1.msra.mxu0 0.0
        %1013 = vmatprep.subr.mxu0 0.0
        %1014 = vmatpush1.msra.mxu0 0.0
        %1015 = vmatprep.subr.mxu0 0.0
        %1016 = vmatpush1.msra.mxu0 0.0
        %1017 = vmatprep.subr.mxu0 0.0
        %1018 = vmatpush1.msra.mxu0 0.0
        %1019 = vmatprep.subr.mxu0 0.0
        %1020 = vmatpush1.msra.mxu0 0.0
        %1021 = vmatprep.subr.mxu0 0.0
        %1022 = vmatpush1.msra.mxu0 0.0
        %1023 = vmatprep.subr.mxu0 0.0
        %1024 = vmatpush1.msra.mxu0 0.0
        %1025 = vmatprep.subr.mxu0 0.0
        %1026 = vmatpush1.msra.mxu0 0.0
        %1027 = vmatprep.subr.mxu0 0.0
        %1028 = vmatpush1.msra.mxu0 0.0
        %1029 = vmatprep.subr.mxu0 0.0
        %1030 = vmatpush1.msra.mxu0 0.0
        %1031 = vmatprep.subr.mxu0 0.0
        %1032 = vmatpush1.msra.mxu0 0.0
        %1033 = vmatprep.mubr.f32.mxu0 0.0
        %1034 = vmatmul.mubr.f32.gmra.mrb[0].mxu0 %v965
        %v1035 = vpop.f32.mrb[0].mxu0
        %v1036 = vadd.f32 0.0, %v1035
        %v1037 = vpop.f32.mrb[0].mxu0
        %1038 = vdwg.mxu0
        %v1039 = vadd.f32 %v952, %v1036
        %v1040 = vld [vmem:[#allocation2 + $0x4] sm:$0xff]
        %v1042 = vcombine.high %v1040, %v1040
        %1043 = vrot.lane.b32.xlu0 %v1040, 111
        %v1044 = vpop.permute.xlu0 %1043
        %1045 = vrot.lane.b32.xlu0 %v1042, 111
        %v1046 = vpop.permute.xlu0 %1045
        %vm1047 = vcmask 908288
        %v1048 = vsel %vm1047, %v1044, %v1046
        %v1050 = vsel %vm513, %v1048, 0.0
        %s1051 = scalar_lea.vmem [#allocation8], 32
        %v1052 = vld [vmem:[%s1051] sm:$0x7]
        %v1054 = vsel %vm346, %v1052, 0
        %v1057 = vsel %vm350, %v1050, 0
        %1059 = vmatprep.subr.mxu0 0.0
        %1060 = vmatpush1.msra.mxu0 %v1057
        %1061 = vmatprep.subr.mxu0 0.0
        %1062 = vmatpush1.msra.mxu0 0.0
        %1063 = vmatprep.subr.mxu0 0.0
        %1064 = vmatpush1.msra.mxu0 0.0
        %1065 = vmatprep.subr.mxu0 0.0
        %1066 = vmatpush1.msra.mxu0 0.0
        %1067 = vmatprep.subr.mxu0 0.0
        %1068 = vmatpush1.msra.mxu0 0.0
        %1069 = vmatprep.subr.mxu0 0.0
        %1070 = vmatpush1.msra.mxu0 0.0
        %1071 = vmatprep.subr.mxu0 0.0
        %1072 = vmatpush1.msra.mxu0 0.0
        %1073 = vmatprep.subr.mxu0 0.0
        %1074 = vmatpush1.msra.mxu0 0.0
        %1075 = vmatprep.subr.mxu0 0.0
        %1076 = vmatpush1.msra.mxu0 0.0
        %1077 = vmatprep.subr.mxu0 0.0
        %1078 = vmatpush1.msra.mxu0 0.0
        %1079 = vmatprep.subr.mxu0 0.0
        %1080 = vmatpush1.msra.mxu0 0.0
        %1081 = vmatprep.subr.mxu0 0.0
        %1082 = vmatpush1.msra.mxu0 0.0
        %1083 = vmatprep.subr.mxu0 0.0
        %1084 = vmatpush1.msra.mxu0 0.0
        %1085 = vmatprep.subr.mxu0 0.0
        %1086 = vmatpush1.msra.mxu0 0.0
        %1087 = vmatprep.subr.mxu0 0.0
        %1088 = vmatpush1.msra.mxu0 0.0
        %1089 = vmatprep.subr.mxu0 0.0
        %1090 = vmatpush1.msra.mxu0 0.0
        %1091 = vmatprep.subr.mxu0 0.0
        %1092 = vmatpush1.msra.mxu0 0.0
        %1093 = vmatprep.subr.mxu0 0.0
        %1094 = vmatpush1.msra.mxu0 0.0
        %1095 = vmatprep.subr.mxu0 0.0
        %1096 = vmatpush1.msra.mxu0 0.0
        %1097 = vmatprep.subr.mxu0 0.0
        %1098 = vmatpush1.msra.mxu0 0.0
        %1099 = vmatprep.subr.mxu0 0.0
        %1100 = vmatpush1.msra.mxu0 0.0
        %1101 = vmatprep.subr.mxu0 0.0
        %1102 = vmatpush1.msra.mxu0 0.0
        %1103 = vmatprep.subr.mxu0 0.0
        %1104 = vmatpush1.msra.mxu0 0.0
        %1105 = vmatprep.subr.mxu0 0.0
        %1106 = vmatpush1.msra.mxu0 0.0
        %1107 = vmatprep.subr.mxu0 0.0
        %1108 = vmatpush1.msra.mxu0 0.0
        %1109 = vmatprep.subr.mxu0 0.0
        %1110 = vmatpush1.msra.mxu0 0.0
        %1111 = vmatprep.subr.mxu0 0.0
        %1112 = vmatpush1.msra.mxu0 0.0
        %1113 = vmatprep.subr.mxu0 0.0
        %1114 = vmatpush1.msra.mxu0 0.0
        %1115 = vmatprep.subr.mxu0 0.0
        %1116 = vmatpush1.msra.mxu0 0.0
        %1117 = vmatprep.subr.mxu0 0.0
        %1118 = vmatpush1.msra.mxu0 0.0
        %1119 = vmatprep.subr.mxu0 0.0
        %1120 = vmatpush1.msra.mxu0 0.0
        %1121 = vmatprep.subr.mxu0 0.0
        %1122 = vmatpush1.msra.mxu0 0.0
        %1123 = vmatprep.mubr.f32.mxu0 0.0
        %1124 = vmatmul.mubr.f32.gmra.mrb[0].mxu0 %v1054
        %v1125 = vpop.f32.mrb[0].mxu0
        %v1126 = vadd.f32 0.0, %v1125
        %v1127 = vpop.f32.mrb[0].mxu0
        %1128 = vdwg.mxu0
        %v1129 = vadd.f32 %v1039, %v1126
        %1130 = vst [vmem:[%s298] sm:$0x7] %v1129
        %s1131 = sand.u32 %s145, 1
        %s1132 = scalar_lea.sflag [#allocation5], %s1131
        %s1133 = sand.u32 %s145, 1
        %s1134 = smul.addr %s1133, 4
        %s1135 = scalar_lea.vmem [#allocation11], %s1134
        // Predicated region
        $region53: #{tpu_custom_call.1} parent=35 // pred_check
          %p1136 = pneg %p155
        $region54: #{tpu_custom_call.1} parent=35 // pred_check_branch
          %1138 = sbr.rel (%p1136) target = $region56
        $region55: #{tpu_custom_call.1} parent=35 // pred_region
          %s1140 = ssub.s32 64, 64
          %1141 = vsyncadd %s1132, %s1140
          %s1142 = smul.addr %s29, 2
          %s1143 = sadd.s32 %s30, %s1142
          %s1144 = smul.addr %s1143, 64
          %s1145 = scalar_lea.hbm %s4, %s1144
          %s1147 = sshll.u32 %s1135, 4
          %s1148 = int_to_ptr.vmem [resolvable:$true] %s1147
          %1150 = dma.vmem_to_hbm [thread:$0]  %s1148, 64, %s1145, %s1132
        $region56: #{tpu_custom_call.1} parent=35 // pred_fallthru
          _
      $region36: #{tpu_custom_call.1} parent=5 // pred_fallthru
        _
      %p1151 = scmp.le.s32.totalorder 2, %s20
      // Predicated region
      $region57: #{tpu_custom_call.1} parent=5 // pred_check
        %p1152 = pneg %p1151
      $region58: #{tpu_custom_call.1} parent=5 // pred_check_branch
        %1154 = sbr.rel (%p1152) target = $region60
      $region59: #{tpu_custom_call.1} parent=5 // pred_region
        %s1155 = ssub.s32 %s20, 2
        // Predicated region
        $region61: #{tpu_custom_call.1} parent=59 // pred_check
          %p1156 = pneg %p161
        $region62: #{tpu_custom_call.1} parent=59 // pred_check_branch
          %1158 = sbr.rel (%p1156) target = $region64
        $region63: #{tpu_custom_call.1} parent=59 // pred_region
          %s1159 = sand.u32 %s146, 1
          %s1160 = scalar_lea.sflag [#allocation5], %s1159
          %s1161 = sand.u32 %s146, 1
          %s1162 = smul.addr %s1161, 4
          %s1163 = scalar_lea.vmem [#allocation11], %s1162
          %1164 = dma.done %s1160, 64
        $region64: #{tpu_custom_call.1} parent=59 // pred_fallthru
          _
      $region60: #{tpu_custom_call.1} parent=5 // pred_fallthru
        _
    $region6: #{tpu_custom_call.1} parent=1 // loop_footer
      %s24 = sadd.s32 1, %s20
    $region7: #{tpu_custom_call.1} parent=1 // loop_footer_branch
      %19 = sbr.rel target = $region3
    $region8: #{tpu_custom_call.1} parent=1 // loop_exit
      _
    %1165 = vsyncpa [#allocation4], 1
    %s1166 = scalar_lea.sflag [#allocation4], 1
    %1167 = vsyncpa %s1166, 1
    %1168 = vsyncpa [#allocation7], 1
    %s1169 = scalar_lea.sflag [#allocation7], 1
    %1170 = vsyncpa %s1169, 1
    %1171 = vsyncpa [#allocation10], 1
    %1172 = vsyncpa [#allocation5], 1
    %s1173 = scalar_lea.sflag [#allocation5], 1
    %1174 = vsyncpa %s1173, 1

</llo_original>
